<compile_context>
chip_gen: v7x
topology: tpu7x:2x2x1
jax: 0.10.0
libtpu: 0.0.40
codegen_flags: <defaults>
</compile_context>

<pallas_src>
import functools

import jax
import jax.numpy as jnp
from jax.experimental import pallas as pl
from jax.experimental.pallas import tpu as pltpu


# ----------------------------------------------------------------------------
# Per-generation tiling constants
# ----------------------------------------------------------------------------
def _tpu_tiling():
    """Return (tile_rows, vmem_limit_bytes) sized for this TPU's VMEM."""
    try:
        vmem = getattr(pltpu.get_tpu_info(), "vmem_capacity_bytes", 64 * 2**20)
    except Exception:  # pragma: no cover - conservative fallback
        vmem = 64 * 2**20
    if vmem >= 96 * 2**20:          # v5e / v6e: 128 MiB VMEM, single TC
        return 2048, 64 * 2**20
    return 1024, 40 * 2**20         # v7x: 64 MiB VMEM, 2 TCs per chip


_TM_DEFAULT, _VMEM_LIMIT = _tpu_tiling()


def _round_up(x, m):
    return (x + m - 1) // m * m


# ----------------------------------------------------------------------------
# Pallas kernel: fused  out = act(x @ w + b)      (bf16 MXU, f32 epilogue)
# ----------------------------------------------------------------------------
def _matmul_bias_act_kernel(x_ref, w_ref, b_ref, o_ref, *, relu):
    acc = jnp.dot(x_ref[...], w_ref[...], preferred_element_type=jnp.float32)
    acc = acc + b_ref[...]               # (1, N) f32 bias -> broadcasts
    if relu:
        acc = jnp.maximum(acc, 0.0)      # f32 VPU epilogue (v5e has no bf16 VPU)
    o_ref[...] = acc.astype(o_ref.dtype)


def matmul_bias_act(x, w, b, *, relu, out_dtype=jnp.float32, tm=_TM_DEFAULT):
    """x: (M, K), w: (K, N) bf16, b: (N,) -> (M, N) out_dtype.

    M is tiled with a parallel 1-D grid; K and N stay as full blocks
    (K <= a few thousand, N <= 128 for this network).
    """
    M, K = x.shape
    K2, N = w.shape
    assert K == K2
    x = x.astype(w.dtype)                        # bf16 into the MXU
    b2 = b.reshape(1, N).astype(jnp.float32)

    if M <= tm:
        tm = M                                   # single full-extent block (always legal)
    grid_m = pl.cdiv(M, tm)

    return pl.pallas_call(
        functools.partial(_matmul_bias_act_kernel, relu=relu),
        out_shape=jax.ShapeDtypeStruct((M, N), out_dtype),
        grid=(grid_m,),
        in_specs=[
            pl.BlockSpec((tm, K), lambda i: (i, 0)),   # streamed row tiles
            pl.BlockSpec((K, N), lambda i: (0, 0)),    # weights resident
            pl.BlockSpec((1, N), lambda i: (0, 0)),    # bias resident
        ],
        out_specs=pl.BlockSpec((tm, N), lambda i: (i, 0)),
        compiler_params=pltpu.CompilerParams(
            dimension_semantics=("parallel",),         # megacore-shard rows on v7x
            vmem_limit_bytes=_VMEM_LIMIT,
        ),
    )(x, w, b2)


# ----------------------------------------------------------------------------
# im2col glue (plain JAX; static strided slicing only)
# ----------------------------------------------------------------------------
def im2col_nhwc(x_nhwc, ksize, stride):
    """x: (B, H, W, C) -> patches (B*Ho*Wo, ksize*ksize*C), columns (ky,kx,c)."""
    B, H, W, C = x_nhwc.shape
    Ho = (H - ksize) // stride + 1
    Wo = (W - ksize) // stride + 1
    slabs = []
    for ky in range(ksize):
        for kx in range(ksize):
            slab = x_nhwc[:,
                          ky: ky + stride * (Ho - 1) + 1: stride,
                          kx: kx + stride * (Wo - 1) + 1: stride,
                          :]                      # (B, Ho, Wo, C)
            slabs.append(slab)
    p = jnp.stack(slabs, axis=3)                  # (B, Ho, Wo, k*k, C)
    return p.reshape(B * Ho * Wo, ksize * ksize * C), Ho, Wo


def conv_weight_to_matrix(w_oihw):
    """(Cout, Cin, kH, kW) -> (kH*kW*Cin, Cout) matching im2col column order."""
    Cout, Cin, kH, kW = w_oihw.shape
    return jnp.transpose(w_oihw, (2, 3, 1, 0)).reshape(kH * kW * Cin, Cout)


# ----------------------------------------------------------------------------
# One-time parameter preparation (weight layout / dtype / padding)
# ----------------------------------------------------------------------------
def prepare_params(params, input_shape, compute_dtype=jnp.bfloat16):
    C, H, W = input_shape
    H1, W1 = (H - 8) // 4 + 1, (W - 8) // 4 + 1
    H2, W2 = (H1 - 4) // 2 + 1, (W1 - 4) // 2 + 1
    n_actions = params["w_fc"].shape[0]
    n_pad = _round_up(n_actions, 128)

    # FC columns: PyTorch flattens NCHW (c, h, w); we flatten NHWC (h, w, c).
    # Permuting the weight columns once makes the runtime activation transpose
    # unnecessary and is bit-identical in exact arithmetic.
    w_fc = params["w_fc"].reshape(n_actions, 32, H2, W2)
    w_fc = jnp.transpose(w_fc, (0, 2, 3, 1)).reshape(n_actions, 32 * H2 * W2)
    w_fc_m = jnp.pad(w_fc.T.astype(compute_dtype),
                     ((0, 0), (0, n_pad - n_actions)))          # (K, 128) lane-dense
    b_fc_p = jnp.pad(params["b_fc"].astype(jnp.float32), (0, n_pad - n_actions))

    return {
        "w1m": conv_weight_to_matrix(params["w1"]).astype(compute_dtype),
        "b1": params["b1"].astype(jnp.float32),
        "w2m": conv_weight_to_matrix(params["w2"]).astype(compute_dtype),
        "b2": params["b2"].astype(jnp.float32),
        "w_fcm": w_fc_m,
        "b_fcp": b_fc_p,
    }


# ----------------------------------------------------------------------------
# DQN forward
# ----------------------------------------------------------------------------
def dqn_forward(x_nchw, p, *, n_actions):
    """x: (B, C, H, W) f32 -> (B, n_actions) f32."""
    B = x_nchw.shape[0]
    x_nhwc = jnp.transpose(x_nchw, (0, 2, 3, 1)).astype(jnp.bfloat16)

    # conv1: Conv2d(Cin, 16, kernel=8, stride=4) + ReLU
    p1, H1, W1 = im2col_nhwc(x_nhwc, ksize=8, stride=4)
    y1 = matmul_bias_act(p1, p["w1m"], p["b1"], relu=True, out_dtype=jnp.bfloat16)
    y1 = y1.reshape(B, H1, W1, 16)                               # NHWC

    # conv2: Conv2d(16, 32, kernel=4, stride=2) + ReLU
    p2, H2, W2 = im2col_nhwc(y1, ksize=4, stride=2)
    y2 = matmul_bias_act(p2, p["w2m"], p["b2"], relu=True, out_dtype=jnp.bfloat16)

    # flatten in NHWC order (FC weights were permuted to match), then fc.
    flat = y2.reshape(B, H2 * W2 * 32)
    out = matmul_bias_act(flat, p["w_fcm"], p["b_fcp"], relu=False,
                          out_dtype=jnp.float32)                 # (B, 128) padded
    return out[:, :n_actions]


# ----------------------------------------------------------------------------
# Pure-JAX f32 reference (for correctness check only)
# ----------------------------------------------------------------------------
def dqn_forward_ref(x_nchw, params):
    w1, b1, w2, b2, w_fc, b_fc = (
        params["w1"], params["b1"], params["w2"], params["b2"],
        params["w_fc"], params["b_fc"],
    )
    dn = ("NCHW", "OIHW", "NCHW")
    y = jax.lax.conv_general_dilated(x_nchw, w1, (4, 4), "VALID",
                                     dimension_numbers=dn)
    y = jnp.maximum(y + b1[None, :, None, None], 0.0)
    y = jax.lax.conv_general_dilated(y, w2, (2, 2), "VALID",
                                     dimension_numbers=dn)
    y = jnp.maximum(y + b2[None, :, None, None], 0.0)
    flat = y.reshape(y.shape[0], -1)
    return flat @ w_fc.T + b_fc


# ----------------------------------------------------------------------------
# Deterministic parameter init
# ----------------------------------------------------------------------------
def init_params(key, input_shape, n_actions):
    C, H, W = input_shape
    k1, k2, k3, k4, k5, k6 = jax.random.split(key, 6)
    H1 = (H - 8) // 4 + 1
    W1 = (W - 8) // 4 + 1
    H2 = (H1 - 4) // 2 + 1
    W2 = (W1 - 4) // 2 + 1
    conv_out_size = 32 * H2 * W2
    return {
        "w1":   0.05 * jax.random.normal(k1, (16, C, 8, 8), jnp.float32),
        "b1":   0.05 * jax.random.normal(k2, (16,), jnp.float32),
        "w2":   0.05 * jax.random.normal(k3, (32, 16, 4, 4), jnp.float32),
        "b2":   0.05 * jax.random.normal(k4, (32,), jnp.float32),
        "w_fc": 0.05 * jax.random.normal(k5, (n_actions, conv_out_size), jnp.float32),
        "b_fc": 0.05 * jax.random.normal(k6, (n_actions,), jnp.float32),
    }


if __name__ == "__main__":
    key = jax.random.PRNGKey(0)
    kx, kp = jax.random.split(key)

    # small-but-valid shapes: B=2, C=4, H=W=32 -> conv1 7x7 -> conv2 2x2
    # conv_out_size = 32*2*2 = 128, n_actions = 4 (Breakout)
    B, C, H, W, n_actions = 2, 4, 32, 32, 4
    x = jax.random.normal(kx, (B, C, H, W), jnp.float32)
    params = init_params(kp, (C, H, W), n_actions)
    prepped = prepare_params(params, (C, H, W))

    fwd = jax.jit(functools.partial(dqn_forward, n_actions=n_actions))
    out = jax.block_until_ready(fwd(x, prepped))

    ref = jax.block_until_ready(dqn_forward_ref(x, params))
    assert out.shape == (B, n_actions)
    # bf16 MXU inputs -> relaxed tolerance vs the pure-f32 reference.
    assert jnp.allclose(out, ref, rtol=3e-2, atol=3e-2), (
        "mismatch vs reference: max abs diff "
        f"{float(jnp.max(jnp.abs(out - ref)))}")

    print("KERNEL_OK")
</pallas_src>

<mosaic_0001>
module attributes {stable_mosaic.version = 11 : i64} {
  func.func @_matmul_bias_act_kernel(%arg0: i32, %arg1: memref<98x256xbf16, #tpu.memory_space<vmem>>, %arg2: memref<256x16xbf16, #tpu.memory_space<vmem>>, %arg3: memref<1x16xf32, #tpu.memory_space<vmem>>, %arg4: memref<98x16xbf16, #tpu.memory_space<vmem>>) attributes {dimension_semantics = [#tpu.dimension_semantics<parallel>], iteration_bounds = array<i64: 1>, scalar_prefetch = 0 : i64, scratch_operands = 0 : i64, tpu.core_type = #tpu.core_type<tc>, window_params = [{transform_indices = @transform_0, window_bounds = array<i64: 98, 256>}, {pipeline_mode = #tpu.pipeline_mode<synchronous>, transform_indices = @transform_1, window_bounds = array<i64: 256, 16>}, {pipeline_mode = #tpu.pipeline_mode<synchronous>, transform_indices = @transform_2, window_bounds = array<i64: 1, 16>}, {transform_indices = @transform_3, window_bounds = array<i64: 98, 16>}]} {
    %c0 = arith.constant 0 : index
    %c0_0 = arith.constant 0 : index
    %0 = vector.load %arg1[%c0, %c0_0] : memref<98x256xbf16, #tpu.memory_space<vmem>>, vector<98x256xbf16>
    %c0_1 = arith.constant 0 : index
    %c0_2 = arith.constant 0 : index
    %1 = vector.load %arg2[%c0_1, %c0_2] : memref<256x16xbf16, #tpu.memory_space<vmem>>, vector<256x16xbf16>
    %cst = arith.constant dense<0.000000e+00> : vector<98x16xf32>
    %2 = tpu.matmul %0, %1, %cst {dimension_numbers = #tpu.dot_dimension_numbers<[1], [0], [0], [1], [0, 0, 1, 1], [], []>} : vector<98x256xbf16>, vector<256x16xbf16>, vector<98x16xf32> -> vector<98x16xf32>
    %c0_3 = arith.constant 0 : index
    %c0_4 = arith.constant 0 : index
    %3 = vector.load %arg3[%c0_3, %c0_4] : memref<1x16xf32, #tpu.memory_space<vmem>>, vector<1x16xf32>
    %4 = vector.broadcast %3 : vector<1x16xf32> to vector<98x16xf32>
    %5 = arith.addf %2, %4 : vector<98x16xf32>
    %cst_5 = arith.constant 0.000000e+00 : f32
    %6 = vector.broadcast %cst_5 : f32 to vector<98x16xf32>
    %7 = arith.maximumf %5, %6 : vector<98x16xf32>
    %8 = arith.truncf %7 : vector<98x16xf32> to vector<98x16xbf16>
    %c0_6 = arith.constant 0 : index
    %c0_7 = arith.constant 0 : index
    %9 = vector.load %arg4[%c0_6, %c0_7] : memref<98x16xbf16, #tpu.memory_space<vmem>>, vector<98x16xbf16>
    tpu.vector_store %arg4[%c0_6, %c0_7], %8 {strides = array<i32>} : memref<98x16xbf16, #tpu.memory_space<vmem>>, vector<98x16xbf16>,
    return
  }
  func.func @transform_0(%arg0: i32) -> (i32, i32) {
    %c0_i32 = arith.constant 0 : i32
    %c0_i32_0 = arith.constant 0 : i32
    return %arg0, %c0_i32 : i32, i32
  }
  func.func @transform_1(%arg0: i32) -> (i32, i32) {
    %c0_i32 = arith.constant 0 : i32
    %c0_i32_0 = arith.constant 0 : i32
    %c0_i32_1 = arith.constant 0 : i32
    return %c0_i32, %c0_i32_0 : i32, i32
  }
  func.func @transform_2(%arg0: i32) -> (i32, i32) {
    %c0_i32 = arith.constant 0 : i32
    %c0_i32_0 = arith.constant 0 : i32
    %c0_i32_1 = arith.constant 0 : i32
    return %c0_i32, %c0_i32_0 : i32, i32
  }
  func.func @transform_3(%arg0: i32) -> (i32, i32) {
    %c0_i32 = arith.constant 0 : i32
    %c0_i32_0 = arith.constant 0 : i32
    return %arg0, %c0_i32 : i32, i32
  }
}

module attributes {stable_mosaic.version = 11 : i64} {
  func.func @_matmul_bias_act_kernel(%arg0: i32, %arg1: memref<8x256xbf16, #tpu.memory_space<vmem>>, %arg2: memref<256x32xbf16, #tpu.memory_space<vmem>>, %arg3: memref<1x32xf32, #tpu.memory_space<vmem>>, %arg4: memref<8x32xbf16, #tpu.memory_space<vmem>>) attributes {dimension_semantics = [#tpu.dimension_semantics<parallel>], iteration_bounds = array<i64: 1>, scalar_prefetch = 0 : i64, scratch_operands = 0 : i64, tpu.core_type = #tpu.core_type<tc>, window_params = [{transform_indices = @transform_0, window_bounds = array<i64: 8, 256>}, {pipeline_mode = #tpu.pipeline_mode<synchronous>, transform_indices = @transform_1, window_bounds = array<i64: 256, 32>}, {pipeline_mode = #tpu.pipeline_mode<synchronous>, transform_indices = @transform_2, window_bounds = array<i64: 1, 32>}, {transform_indices = @transform_3, window_bounds = array<i64: 8, 32>}]} {
    %c0 = arith.constant 0 : index
    %c0_0 = arith.constant 0 : index
    %0 = vector.load %arg1[%c0, %c0_0] : memref<8x256xbf16, #tpu.memory_space<vmem>>, vector<8x256xbf16>
    %c0_1 = arith.constant 0 : index
    %c0_2 = arith.constant 0 : index
    %1 = vector.load %arg2[%c0_1, %c0_2] : memref<256x32xbf16, #tpu.memory_space<vmem>>, vector<256x32xbf16>
    %cst = arith.constant dense<0.000000e+00> : vector<8x32xf32>
    %2 = tpu.matmul %0, %1, %cst {dimension_numbers = #tpu.dot_dimension_numbers<[1], [0], [0], [1], [0, 0, 1, 1], [], []>} : vector<8x256xbf16>, vector<256x32xbf16>, vector<8x32xf32> -> vector<8x32xf32>
    %c0_3 = arith.constant 0 : index
    %c0_4 = arith.constant 0 : index
    %3 = vector.load %arg3[%c0_3, %c0_4] : memref<1x32xf32, #tpu.memory_space<vmem>>, vector<1x32xf32>
    %4 = vector.broadcast %3 : vector<1x32xf32> to vector<8x32xf32>
    %5 = arith.addf %2, %4 : vector<8x32xf32>
    %cst_5 = arith.constant 0.000000e+00 : f32
    %6 = vector.broadcast %cst_5 : f32 to vector<8x32xf32>
    %7 = arith.maximumf %5, %6 : vector<8x32xf32>
    %8 = arith.truncf %7 : vector<8x32xf32> to vector<8x32xbf16>
    %c0_6 = arith.constant 0 : index
    %c0_7 = arith.constant 0 : index
    %9 = vector.load %arg4[%c0_6, %c0_7] : memref<8x32xbf16, #tpu.memory_space<vmem>>, vector<8x32xbf16>
    tpu.vector_store %arg4[%c0_6, %c0_7], %8 {strides = array<i32>} : memref<8x32xbf16, #tpu.memory_space<vmem>>, vector<8x32xbf16>,
    return
  }
  func.func @transform_0(%arg0: i32) -> (i32, i32) {
    %c0_i32 = arith.constant 0 : i32
    %c0_i32_0 = arith.constant 0 : i32
    return %arg0, %c0_i32 : i32, i32
  }
  func.func @transform_1(%arg0: i32) -> (i32, i32) {
    %c0_i32 = arith.constant 0 : i32
    %c0_i32_0 = arith.constant 0 : i32
    %c0_i32_1 = arith.constant 0 : i32
    return %c0_i32, %c0_i32_0 : i32, i32
  }
  func.func @transform_2(%arg0: i32) -> (i32, i32) {
    %c0_i32 = arith.constant 0 : i32
    %c0_i32_0 = arith.constant 0 : i32
    %c0_i32_1 = arith.constant 0 : i32
    return %c0_i32, %c0_i32_0 : i32, i32
  }
  func.func @transform_3(%arg0: i32) -> (i32, i32) {
    %c0_i32 = arith.constant 0 : i32
    %c0_i32_0 = arith.constant 0 : i32
    return %arg0, %c0_i32 : i32, i32
  }
}

module attributes {stable_mosaic.version = 11 : i64} {
  func.func @_matmul_bias_act_kernel(%arg0: i32, %arg1: memref<2x128xbf16, #tpu.memory_space<vmem>>, %arg2: memref<128x128xbf16, #tpu.memory_space<vmem>>, %arg3: memref<1x128xf32, #tpu.memory_space<vmem>>, %arg4: memref<2x128xf32, #tpu.memory_space<vmem>>) attributes {dimension_semantics = [#tpu.dimension_semantics<parallel>], iteration_bounds = array<i64: 1>, scalar_prefetch = 0 : i64, scratch_operands = 0 : i64, tpu.core_type = #tpu.core_type<tc>, window_params = [{transform_indices = @transform_0, window_bounds = array<i64: 2, 128>}, {pipeline_mode = #tpu.pipeline_mode<synchronous>, transform_indices = @transform_1, window_bounds = array<i64: 128, 128>}, {pipeline_mode = #tpu.pipeline_mode<synchronous>, transform_indices = @transform_2, window_bounds = array<i64: 1, 128>}, {transform_indices = @transform_3, window_bounds = array<i64: 2, 128>}]} {
    %c0 = arith.constant 0 : index
    %c0_0 = arith.constant 0 : index
    %0 = vector.load %arg1[%c0, %c0_0] : memref<2x128xbf16, #tpu.memory_space<vmem>>, vector<2x128xbf16>
    %c0_1 = arith.constant 0 : index
    %c0_2 = arith.constant 0 : index
    %1 = vector.load %arg2[%c0_1, %c0_2] : memref<128x128xbf16, #tpu.memory_space<vmem>>, vector<128x128xbf16>
    %cst = arith.constant dense<0.000000e+00> : vector<2x128xf32>
    %2 = tpu.matmul %0, %1, %cst {dimension_numbers = #tpu.dot_dimension_numbers<[1], [0], [0], [1], [0, 0, 1, 1], [], []>} : vector<2x128xbf16>, vector<128x128xbf16>, vector<2x128xf32> -> vector<2x128xf32>
    %c0_3 = arith.constant 0 : index
    %c0_4 = arith.constant 0 : index
    %3 = vector.load %arg3[%c0_3, %c0_4] : memref<1x128xf32, #tpu.memory_space<vmem>>, vector<1x128xf32>
    %4 = vector.broadcast %3 : vector<1x128xf32> to vector<2x128xf32>
    %5 = arith.addf %2, %4 : vector<2x128xf32>
    %c0_5 = arith.constant 0 : index
    %c0_6 = arith.constant 0 : index
    %6 = vector.load %arg4[%c0_5, %c0_6] : memref<2x128xf32, #tpu.memory_space<vmem>>, vector<2x128xf32>
    tpu.vector_store %arg4[%c0_5, %c0_6], %5 {strides = array<i32>} : memref<2x128xf32, #tpu.memory_space<vmem>>, vector<2x128xf32>,
    return
  }
  func.func @transform_0(%arg0: i32) -> (i32, i32) {
    %c0_i32 = arith.constant 0 : i32
    %c0_i32_0 = arith.constant 0 : i32
    return %arg0, %c0_i32 : i32, i32
  }
  func.func @transform_1(%arg0: i32) -> (i32, i32) {
    %c0_i32 = arith.constant 0 : i32
    %c0_i32_0 = arith.constant 0 : i32
    %c0_i32_1 = arith.constant 0 : i32
    return %c0_i32, %c0_i32_0 : i32, i32
  }
  func.func @transform_2(%arg0: i32) -> (i32, i32) {
    %c0_i32 = arith.constant 0 : i32
    %c0_i32_0 = arith.constant 0 : i32
    %c0_i32_1 = arith.constant 0 : i32
    return %c0_i32, %c0_i32_0 : i32, i32
  }
  func.func @transform_3(%arg0: i32) -> (i32, i32) {
    %c0_i32 = arith.constant 0 : i32
    %c0_i32_0 = arith.constant 0 : i32
    return %arg0, %c0_i32 : i32, i32
  }
}

</mosaic_0001>

<llo_original>
// kernel: dqn_forward.3
$region0: #{dqn_forward.3}
  #allocation0 [shape = 'u32[]', space=smem, size = 0x4, offset = 0x4, fixed_abs, tag = 'smem constant byte address 0x4 - core index']
  #allocation1 [shape = 'u32[144,128]{1,0:T(1,128)}', space=vmem, size = 0x12000, scoped, tag = 'internal scratch']
  %s0 = inlined_call_operand.vmem [shape: bf16[98,256], index: 0, kind: input, shape index: {}]
  %s1 = inlined_call_operand.vmem [shape: bf16[256,16], index: 1, kind: input, shape index: {}]
  %s2 = inlined_call_operand.vmem [shape: f32[1,16], index: 2, kind: input, shape index: {}]
  %s3 = inlined_call_operand.vmem [shape: bf16[98,16], index: 3, kind: output, shape index: {}]
  %s4 = sld [smem:[#allocation0]]
  $region22: #{dqn_forward.3} parent=0
    _
  %s6 = ssub.s32 1, %s4
  %s7 = scalar_select 0, %s6, %s4
  // Predicated region
  $region2: #{dqn_forward.3} parent=0 // pred_check
    _
  $region3: #{dqn_forward.3} parent=0 // pred_check_branch
    %9 = sbr.rel (0) target = $region5
  $region4: #{dqn_forward.3} parent=0 // pred_region
    _
  $region5: #{dqn_forward.3} parent=0 // pred_fallthru
    _
  // Predicated region
  $region6: #{dqn_forward.3} parent=0 // pred_check
    _
  $region7: #{dqn_forward.3} parent=0 // pred_check_branch
    %11 = sbr.rel (0) target = $region9
  $region8: #{dqn_forward.3} parent=0 // pred_region
    _
  $region9: #{dqn_forward.3} parent=0 // pred_fallthru
    _
  // Predicated region
  $region10: #{dqn_forward.3} parent=0 // pred_check
    _
  $region11: #{dqn_forward.3} parent=0 // pred_check_branch
    %13 = sbr.rel (0) target = $region13
  $region12: #{dqn_forward.3} parent=0 // pred_region
    _
  $region13: #{dqn_forward.3} parent=0 // pred_fallthru
    _
  %v15 = vld [vmem:[%s0] sm:$0xff]
  %v16 = vld [vmem:[%s0 + $0x8] sm:$0xff]
  %v17 = vld [vmem:[%s0 + $0x10] sm:$0xff]
  %v18 = vld [vmem:[%s0 + $0x18] sm:$0xff]
  %v19 = vld [vmem:[%s0 + $0x20] sm:$0xff]
  %v20 = vld [vmem:[%s0 + $0x28] sm:$0xff]
  %v21 = vld [vmem:[%s0 + $0x30] sm:$0xff]
  %v22 = vld [vmem:[%s0 + $0x38] sm:$0xff]
  %v23 = vld [vmem:[%s0 + $0x40] sm:$0xff]
  %v24 = vld [vmem:[%s0 + $0x48] sm:$0xff]
  %v25 = vld [vmem:[%s0 + $0x50] sm:$0xff]
  %v26 = vld [vmem:[%s0 + $0x58] sm:$0xff]
  %v27 = vld [vmem:[%s0 + $0x60] sm:$0x11]
  %v28 = vld [vmem:[%s1] sm:$0xf]
  %v29 = vld [vmem:[%s1 + $0x4] sm:$0xf]
  %v30 = vld [vmem:[%s1 + $0x8] sm:$0xf]
  %v31 = vld [vmem:[%s1 + $0xc] sm:$0xf]
  %v32 = vld [vmem:[%s1 + $0x10] sm:$0xf]
  %v33 = vld [vmem:[%s1 + $0x14] sm:$0xf]
  %v34 = vld [vmem:[%s1 + $0x18] sm:$0xf]
  %v35 = vld [vmem:[%s1 + $0x1c] sm:$0xf]
  %v36 = vld [vmem:[%s1 + $0x20] sm:$0xf]
  %v37 = vld [vmem:[%s1 + $0x24] sm:$0xf]
  %v38 = vld [vmem:[%s1 + $0x28] sm:$0xf]
  %v39 = vld [vmem:[%s1 + $0x2c] sm:$0xf]
  %v40 = vld [vmem:[%s1 + $0x30] sm:$0xf]
  %v41 = vld [vmem:[%s1 + $0x34] sm:$0xf]
  %v42 = vld [vmem:[%s1 + $0x38] sm:$0xf]
  %v43 = vld [vmem:[%s1 + $0x3c] sm:$0xf]
  %v44 = vld [vmem:[%s1 + $0x40] sm:$0xf]
  %v45 = vld [vmem:[%s1 + $0x44] sm:$0xf]
  %v46 = vld [vmem:[%s1 + $0x48] sm:$0xf]
  %v47 = vld [vmem:[%s1 + $0x4c] sm:$0xf]
  %v48 = vld [vmem:[%s1 + $0x50] sm:$0xf]
  %v49 = vld [vmem:[%s1 + $0x54] sm:$0xf]
  %v50 = vld [vmem:[%s1 + $0x58] sm:$0xf]
  %v51 = vld [vmem:[%s1 + $0x5c] sm:$0xf]
  %v52 = vld [vmem:[%s1 + $0x60] sm:$0xf]
  %v53 = vld [vmem:[%s1 + $0x64] sm:$0xf]
  %v54 = vld [vmem:[%s1 + $0x68] sm:$0xf]
  %v55 = vld [vmem:[%s1 + $0x6c] sm:$0xf]
  %v56 = vld [vmem:[%s1 + $0x70] sm:$0xf]
  %v57 = vld [vmem:[%s1 + $0x74] sm:$0xf]
  %v58 = vld [vmem:[%s1 + $0x78] sm:$0xf]
  %v59 = vld [vmem:[%s1 + $0x7c] sm:$0xf]
  %v60 = vld [vmem:[%s2] sm:$0x1]
  %v62 = vlaneseq
  %v63 = vshrl.u32 %v62, 7
  %v64 = vsub.s32 0, %v63
  %v65 = vrot.slane %v60, %v64
  %v80 = vunpack.c.l.b16 %v15
  %v81 = vunpack.c.h.b16 %v15
  %v82 = vunpack.c.l.b16 %v16
  %v83 = vunpack.c.h.b16 %v16
  %v84 = vunpack.c.l.b16 %v17
  %v85 = vunpack.c.h.b16 %v17
  %v86 = vunpack.c.l.b16 %v18
  %v87 = vunpack.c.h.b16 %v18
  %v88 = vunpack.c.l.b16 %v19
  %v89 = vunpack.c.h.b16 %v19
  %v90 = vunpack.c.l.b16 %v20
  %v91 = vunpack.c.h.b16 %v20
  %v92 = vunpack.c.l.b16 %v21
  %v93 = vunpack.c.h.b16 %v21
  %v94 = vunpack.c.l.b16 %v22
  %v95 = vunpack.c.h.b16 %v22
  %v96 = vunpack.c.l.b16 %v23
  %v97 = vunpack.c.h.b16 %v23
  %v98 = vunpack.c.l.b16 %v24
  %v99 = vunpack.c.h.b16 %v24
  %v100 = vunpack.c.l.b16 %v25
  %v101 = vunpack.c.h.b16 %v25
  %v102 = vunpack.c.l.b16 %v26
  %v103 = vunpack.c.h.b16 %v26
  %v104 = vunpack.c.l.b16 %v27
  %v105 = vunpack.c.h.b16 %v27
  %v106 = vpack.c.b16 %v82, %v80
  %v107 = vpack.c.b16 %v83, %v81
  %v108 = vpack.c.b16 %v86, %v84
  %v109 = vpack.c.b16 %v87, %v85
  %v110 = vpack.c.b16 %v90, %v88
  %v111 = vpack.c.b16 %v91, %v89
  %v112 = vpack.c.b16 %v94, %v92
  %v113 = vpack.c.b16 %v95, %v93
  %v114 = vpack.c.b16 %v98, %v96
  %v115 = vpack.c.b16 %v99, %v97
  %v116 = vpack.c.b16 %v102, %v100
  %v117 = vpack.c.b16 %v103, %v101
  %v118 = vpack.c.b16 %v104, %v104
  %v119 = vpack.c.b16 %v105, %v105
  %v166 = vunpack.c.l.b16 %v28
  %v167 = vunpack.c.l.b16 %v29
  %v168 = vunpack.c.l.b16 %v30
  %v169 = vunpack.c.l.b16 %v31
  %v170 = vunpack.c.l.b16 %v32
  %v171 = vunpack.c.l.b16 %v33
  %v172 = vunpack.c.l.b16 %v34
  %v173 = vunpack.c.l.b16 %v35
  %v174 = vunpack.c.l.b16 %v36
  %v175 = vunpack.c.l.b16 %v37
  %v176 = vunpack.c.l.b16 %v38
  %v177 = vunpack.c.l.b16 %v39
  %v178 = vunpack.c.l.b16 %v40
  %v179 = vunpack.c.l.b16 %v41
  %v180 = vunpack.c.l.b16 %v42
  %v181 = vunpack.c.l.b16 %v43
  %v182 = vunpack.c.l.b16 %v44
  %v183 = vunpack.c.l.b16 %v45
  %v184 = vunpack.c.l.b16 %v46
  %v185 = vunpack.c.l.b16 %v47
  %v186 = vunpack.c.l.b16 %v48
  %v187 = vunpack.c.l.b16 %v49
  %v188 = vunpack.c.l.b16 %v50
  %v189 = vunpack.c.l.b16 %v51
  %v190 = vunpack.c.l.b16 %v52
  %v191 = vunpack.c.l.b16 %v53
  %v192 = vunpack.c.l.b16 %v54
  %v193 = vunpack.c.l.b16 %v55
  %v194 = vunpack.c.l.b16 %v56
  %v195 = vunpack.c.l.b16 %v57
  %v196 = vunpack.c.l.b16 %v58
  %v197 = vunpack.c.l.b16 %v59
  %v198 = vpack.c.b16 %v167, %v166
  %v199 = vpack.c.b16 %v169, %v168
  %v200 = vpack.c.b16 %v171, %v170
  %v201 = vpack.c.b16 %v173, %v172
  %v202 = vpack.c.b16 %v175, %v174
  %v203 = vpack.c.b16 %v177, %v176
  %v204 = vpack.c.b16 %v179, %v178
  %v205 = vpack.c.b16 %v181, %v180
  %v206 = vpack.c.b16 %v183, %v182
  %v207 = vpack.c.b16 %v185, %v184
  %v208 = vpack.c.b16 %v187, %v186
  %v209 = vpack.c.b16 %v189, %v188
  %v210 = vpack.c.b16 %v191, %v190
  %v211 = vpack.c.b16 %v193, %v192
  %v212 = vpack.c.b16 %v195, %v194
  %v213 = vpack.c.b16 %v197, %v196
  %230 = vmatprep.subr.bf16.mxu0 0
  %231 = vmatpush1.bf16.msra.mxu0 %v198
  %232 = vmatprep.subr.bf16.mxu0 0
  %233 = vmatpush1.bf16.msra.mxu0 %v199
  %234 = vmatprep.subr.bf16.mxu0 0
  %235 = vmatpush1.bf16.msra.mxu0 %v200
  %236 = vmatprep.subr.bf16.mxu0 0
  %237 = vmatpush1.bf16.msra.mxu0 %v201
  %238 = vmatprep.subr.bf16.mxu0 0
  %239 = vmatpush1.bf16.msra.mxu0 %v202
  %240 = vmatprep.subr.bf16.mxu0 0
  %241 = vmatpush1.bf16.msra.mxu0 %v203
  %242 = vmatprep.subr.bf16.mxu0 0
  %243 = vmatpush1.bf16.msra.mxu0 %v204
  %244 = vmatprep.subr.bf16.mxu0 0
  %245 = vmatpush1.bf16.msra.mxu0 %v205
  %246 = vmatprep.subr.bf16.mxu0 0
  %247 = vmatpush1.bf16.msra.mxu0 %v206
  %248 = vmatprep.subr.bf16.mxu0 0
  %249 = vmatpush1.bf16.msra.mxu0 %v207
  %250 = vmatprep.subr.bf16.mxu0 0
  %251 = vmatpush1.bf16.msra.mxu0 %v208
  %252 = vmatprep.subr.bf16.mxu0 0
  %253 = vmatpush1.bf16.msra.mxu0 %v209
  %254 = vmatprep.subr.bf16.mxu0 0
  %255 = vmatpush1.bf16.msra.mxu0 %v210
  %256 = vmatprep.subr.bf16.mxu0 0
  %257 = vmatpush1.bf16.msra.mxu0 %v211
  %258 = vmatprep.subr.bf16.mxu0 0
  %259 = vmatpush1.bf16.msra.mxu0 %v212
  %260 = vmatprep.subr.bf16.mxu0 0
  %261 = vmatpush1.bf16.msra.mxu0 %v213
  %262 = vmatprep.mubr.bf16.mxu0 %v107
  %263 = vmatmul.mubr.bf16.gmra.mrb[0].mxu0 %v106
  %v264 = vpop.f32.mrb[0].mxu0
  %v265 = vadd.f32 %v65, %v264
  %v266 = vpop.f32.mrb[0].mxu0
  %v267 = vpop.f32.mrb[0].mxu0
  %v268 = vadd.f32 %v65, %v267
  %v269 = vpop.f32.mrb[0].mxu0
  %270 = vmatprep.mubr.bf16.mxu0 %v109
  %271 = vmatmul.mubr.bf16.gmra.mrb[0].mxu0 %v108
  %v272 = vpop.f32.mrb[0].mxu0
  %v273 = vadd.f32 %v65, %v272
  %v274 = vpop.f32.mrb[0].mxu0
  %v275 = vpop.f32.mrb[0].mxu0
  %v276 = vadd.f32 %v65, %v275
  %v277 = vpop.f32.mrb[0].mxu0
  %278 = vmatprep.mubr.bf16.mxu0 %v111
  %279 = vmatmul.mubr.bf16.gmra.mrb[0].mxu0 %v110
  %v280 = vpop.f32.mrb[0].mxu0
  %v281 = vadd.f32 %v65, %v280
  %v282 = vpop.f32.mrb[0].mxu0
  %v283 = vpop.f32.mrb[0].mxu0
  %v284 = vadd.f32 %v65, %v283
  %v285 = vpop.f32.mrb[0].mxu0
  %286 = vmatprep.mubr.bf16.mxu0 %v113
  %287 = vmatmul.mubr.bf16.gmra.mrb[0].mxu0 %v112
  %v288 = vpop.f32.mrb[0].mxu0
  %v289 = vadd.f32 %v65, %v288
  %v290 = vpop.f32.mrb[0].mxu0
  %v291 = vpop.f32.mrb[0].mxu0
  %v292 = vadd.f32 %v65, %v291
  %v293 = vpop.f32.mrb[0].mxu0
  %294 = vmatprep.mubr.bf16.mxu0 %v115
  %295 = vmatmul.mubr.bf16.gmra.mrb[0].mxu0 %v114
  %v296 = vpop.f32.mrb[0].mxu0
  %v297 = vadd.f32 %v65, %v296
  %v298 = vpop.f32.mrb[0].mxu0
  %v299 = vpop.f32.mrb[0].mxu0
  %v300 = vadd.f32 %v65, %v299
  %v301 = vpop.f32.mrb[0].mxu0
  %302 = vmatprep.mubr.bf16.mxu0 %v117
  %303 = vmatmul.mubr.bf16.gmra.mrb[0].mxu0 %v116
  %v304 = vpop.f32.mrb[0].mxu0
  %v305 = vadd.f32 %v65, %v304
  %v306 = vpop.f32.mrb[0].mxu0
  %v307 = vpop.f32.mrb[0].mxu0
  %v308 = vadd.f32 %v65, %v307
  %v309 = vpop.f32.mrb[0].mxu0
  %310 = vmatprep.mubr.bf16.mxu0 %v119
  %311 = vmatmul.mubr.bf16.gmra.mrb[0].mxu0 %v118
  %v312 = vpop.f32.mrb[0].mxu0
  %v313 = vadd.f32 %v65, %v312
  %v314 = vpop.f32.mrb[0].mxu0
  %v315 = vpop.f32.mrb[0].mxu0
  %v316 = vpop.f32.mrb[0].mxu0
  %317 = vdwg.mxu0
  %v318 = vmax.f32 %v265, 0.0
  %v319 = vmax.f32 %v268, 0.0
  %v320 = vmax.f32 %v273, 0.0
  %v321 = vmax.f32 %v276, 0.0
  %v322 = vmax.f32 %v281, 0.0
  %v323 = vmax.f32 %v284, 0.0
  %v324 = vmax.f32 %v289, 0.0
  %v325 = vmax.f32 %v292, 0.0
  %v326 = vmax.f32 %v297, 0.0
  %v327 = vmax.f32 %v300, 0.0
  %v328 = vmax.f32 %v305, 0.0
  %v329 = vmax.f32 %v308, 0.0
  %v330 = vmax.f32 %v313, 0.0
  %v331 = vpack.c.bf16 %v319, %v318
  %v332 = vpack.c.bf16 %v321, %v320
  %v333 = vpack.c.bf16 %v323, %v322
  %v334 = vpack.c.bf16 %v325, %v324
  %v335 = vpack.c.bf16 %v327, %v326
  %v336 = vpack.c.bf16 %v329, %v328
  %v337 = vpack.c.bf16 %v330, %v330
  %v345 = vunpack.c.l.b16 %v331
  %v346 = vunpack.c.h.b16 %v331
  %v347 = vunpack.c.l.b16 %v332
  %v348 = vunpack.c.h.b16 %v332
  %v349 = vunpack.c.l.b16 %v333
  %v350 = vunpack.c.h.b16 %v333
  %v351 = vunpack.c.l.b16 %v334
  %v352 = vunpack.c.h.b16 %v334
  %v353 = vunpack.c.l.b16 %v335
  %v354 = vunpack.c.h.b16 %v335
  %v355 = vunpack.c.l.b16 %v336
  %v356 = vunpack.c.h.b16 %v336
  %v357 = vunpack.c.l.b16 %v337
  %v358 = vpack.c.b16 %v345, %v345
  %v359 = vpack.c.b16 %v346, %v346
  %v360 = vpack.c.b16 %v347, %v347
  %v361 = vpack.c.b16 %v348, %v348
  %v362 = vpack.c.b16 %v349, %v349
  %v363 = vpack.c.b16 %v350, %v350
  %v364 = vpack.c.b16 %v351, %v351
  %v365 = vpack.c.b16 %v352, %v352
  %v366 = vpack.c.b16 %v353, %v353
  %v367 = vpack.c.b16 %v354, %v354
  %v368 = vpack.c.b16 %v355, %v355
  %v369 = vpack.c.b16 %v356, %v356
  %v370 = vpack.c.b16 %v357, %v357
  %vm384 = vcmask 125952
  %385 = vst.msk [vmem:[%s3] sm:$0xf] %vm384, %v358
  %386 = vst.msk [vmem:[%s3 + $0x4] sm:$0xf] %vm384, %v359
  %387 = vst.msk [vmem:[%s3 + $0x8] sm:$0xf] %vm384, %v360
  %388 = vst.msk [vmem:[%s3 + $0xc] sm:$0xf] %vm384, %v361
  %389 = vst.msk [vmem:[%s3 + $0x10] sm:$0xf] %vm384, %v362
  %390 = vst.msk [vmem:[%s3 + $0x14] sm:$0xf] %vm384, %v363
  %391 = vst.msk [vmem:[%s3 + $0x18] sm:$0xf] %vm384, %v364
  %392 = vst.msk [vmem:[%s3 + $0x1c] sm:$0xf] %vm384, %v365
  %393 = vst.msk [vmem:[%s3 + $0x20] sm:$0xf] %vm384, %v366
  %394 = vst.msk [vmem:[%s3 + $0x24] sm:$0xf] %vm384, %v367
  %395 = vst.msk [vmem:[%s3 + $0x28] sm:$0xf] %vm384, %v368
  %396 = vst.msk [vmem:[%s3 + $0x2c] sm:$0xf] %vm384, %v369
  %vm397 = vcmask 122880
  %398 = vst.msk [vmem:[%s3 + $0x30] sm:$0x1] %vm397, %v370
  // Predicated region
  $region14: #{dqn_forward.3} parent=0 // pred_check
    _
  $region15: #{dqn_forward.3} parent=0 // pred_check_branch
    %400 = sbr.rel (0) target = $region17
  $region16: #{dqn_forward.3} parent=0 // pred_region
    _
  $region17: #{dqn_forward.3} parent=0 // pred_fallthru
    _
  // Predicated region
  $region18: #{dqn_forward.3} parent=0 // pred_check
    _
  $region19: #{dqn_forward.3} parent=0 // pred_check_branch
    %402 = sbr.rel (0) target = $region21
  $region20: #{dqn_forward.3} parent=0 // pred_region
    _
  $region21: #{dqn_forward.3} parent=0 // pred_fallthru
    _

// kernel: dqn_forward.5
$region0: #{dqn_forward.5}
  #allocation0 [shape = 'u32[]', space=smem, size = 0x4, offset = 0x4, fixed_abs, tag = 'smem constant byte address 0x4 - core index']
  #allocation1 [shape = 'u32[144,128]{1,0:T(1,128)}', space=vmem, size = 0x12000, scoped, tag = 'internal scratch']
  %s0 = inlined_call_operand.vmem [shape: bf16[2,128], index: 0, kind: input, shape index: {}]
  %s1 = inlined_call_operand.vmem [shape: bf16[128,128], index: 1, kind: input, shape index: {}]
  %s2 = inlined_call_operand.vmem [shape: f32[1,128], index: 2, kind: input, shape index: {}]
  %s3 = inlined_call_operand.hbm [shape: f32[2,128], index: 3, kind: output, shape index: {}]
  %s4 = sld [smem:[#allocation0]]
  $region22: #{dqn_forward.5} parent=0
    _
  %s6 = ssub.s32 1, %s4
  %s7 = scalar_select 0, %s6, %s4
  $region1: #{dqn_forward.5} parent=0
    #allocation2 [shape = 'u8[1024]{0}', space=vmem, size = 0x400, scoped, tag = 'output window, operand 0, single buffered']
    #allocation3 [shape = 's32[1]{0}', space=sflag, size = 0x4, scoped, tag = 'scoped memory for dqn_forward.5']
    %8 = vsyncpa [#allocation3], 0
    // Predicated region
    $region2: #{dqn_forward.5} parent=1 // pred_check
      _
    $region3: #{dqn_forward.5} parent=1 // pred_check_branch
      %10 = sbr.rel (0) target = $region5
    $region4: #{dqn_forward.5} parent=1 // pred_region
      _
    $region5: #{dqn_forward.5} parent=1 // pred_fallthru
      _
    // Predicated region
    $region6: #{dqn_forward.5} parent=1 // pred_check
      _
    $region7: #{dqn_forward.5} parent=1 // pred_check_branch
      %12 = sbr.rel (0) target = $region9
    $region8: #{dqn_forward.5} parent=1 // pred_region
      _
    $region9: #{dqn_forward.5} parent=1 // pred_fallthru
      _
    // Predicated region
    $region10: #{dqn_forward.5} parent=1 // pred_check
      _
    $region11: #{dqn_forward.5} parent=1 // pred_check_branch
      %14 = sbr.rel (0) target = $region13
    $region12: #{dqn_forward.5} parent=1 // pred_region
      _
    $region13: #{dqn_forward.5} parent=1 // pred_fallthru
      _
    %v16 = vld [vmem:[%s0] sm:$0x1]
    %v17 = vld [vmem:[%s1] sm:$0xf]
    %v18 = vld [vmem:[%s1 + $0x4] sm:$0xf]
    %v19 = vld [vmem:[%s1 + $0x8] sm:$0xf]
    %v20 = vld [vmem:[%s1 + $0xc] sm:$0xf]
    %v21 = vld [vmem:[%s1 + $0x10] sm:$0xf]
    %v22 = vld [vmem:[%s1 + $0x14] sm:$0xf]
    %v23 = vld [vmem:[%s1 + $0x18] sm:$0xf]
    %v24 = vld [vmem:[%s1 + $0x1c] sm:$0xf]
    %v25 = vld [vmem:[%s1 + $0x20] sm:$0xf]
    %v26 = vld [vmem:[%s1 + $0x24] sm:$0xf]
    %v27 = vld [vmem:[%s1 + $0x28] sm:$0xf]
    %v28 = vld [vmem:[%s1 + $0x2c] sm:$0xf]
    %v29 = vld [vmem:[%s1 + $0x30] sm:$0xf]
    %v30 = vld [vmem:[%s1 + $0x34] sm:$0xf]
    %v31 = vld [vmem:[%s1 + $0x38] sm:$0xf]
    %v32 = vld [vmem:[%s1 + $0x3c] sm:$0xf]
    %v33 = vld [vmem:[%s2] sm:$0x1]
    %v35 = vlaneseq
    %v36 = vshrl.u32 %v35, 7
    %v37 = vsub.s32 0, %v36
    %v38 = vrot.slane %v33, %v37
    %v56 = vunpack.c.l.b16 %v17
    %v57 = vunpack.c.l.b16 %v18
    %v58 = vunpack.c.l.b16 %v19
    %v59 = vunpack.c.l.b16 %v20
    %v60 = vunpack.c.l.b16 %v21
    %v61 = vunpack.c.l.b16 %v22
    %v62 = vunpack.c.l.b16 %v23
    %v63 = vunpack.c.l.b16 %v24
    %v64 = vunpack.c.l.b16 %v25
    %v65 = vunpack.c.l.b16 %v26
    %v66 = vunpack.c.l.b16 %v27
    %v67 = vunpack.c.l.b16 %v28
    %v68 = vunpack.c.l.b16 %v29
    %v69 = vunpack.c.l.b16 %v30
    %v70 = vunpack.c.l.b16 %v31
    %v71 = vunpack.c.l.b16 %v32
    %v72 = vpack.c.b16 %v57, %v56
    %v73 = vpack.c.b16 %v59, %v58
    %v74 = vpack.c.b16 %v61, %v60
    %v75 = vpack.c.b16 %v63, %v62
    %v76 = vpack.c.b16 %v65, %v64
    %v77 = vpack.c.b16 %v67, %v66
    %v78 = vpack.c.b16 %v69, %v68
    %v79 = vpack.c.b16 %v71, %v70
    %88 = vmatprep.subr.bf16.mxu0 0
    %89 = vmatpush1.bf16.msra.mxu0 %v72
    %90 = vmatprep.subr.bf16.mxu0 0
    %91 = vmatpush1.bf16.msra.mxu0 %v73
    %92 = vmatprep.subr.bf16.mxu0 0
    %93 = vmatpush1.bf16.msra.mxu0 %v74
    %94 = vmatprep.subr.bf16.mxu0 0
    %95 = vmatpush1.bf16.msra.mxu0 %v75
    %96 = vmatprep.subr.bf16.mxu0 0
    %97 = vmatpush1.bf16.msra.mxu0 %v76
    %98 = vmatprep.subr.bf16.mxu0 0
    %99 = vmatpush1.bf16.msra.mxu0 %v77
    %100 = vmatprep.subr.bf16.mxu0 0
    %101 = vmatpush1.bf16.msra.mxu0 %v78
    %102 = vmatprep.subr.bf16.mxu0 0
    %103 = vmatpush1.bf16.msra.mxu0 %v79
    %104 = vmatprep.subr.bf16.mxu0 0
    %105 = vmatpush1.bf16.msra.mxu0 0
    %106 = vmatprep.subr.bf16.mxu0 0
    %107 = vmatpush1.bf16.msra.mxu0 0
    %108 = vmatprep.subr.bf16.mxu0 0
    %109 = vmatpush1.bf16.msra.mxu0 0
    %110 = vmatprep.subr.bf16.mxu0 0
    %111 = vmatpush1.bf16.msra.mxu0 0
    %112 = vmatprep.subr.bf16.mxu0 0
    %113 = vmatpush1.bf16.msra.mxu0 0
    %114 = vmatprep.subr.bf16.mxu0 0
    %115 = vmatpush1.bf16.msra.mxu0 0
    %116 = vmatprep.subr.bf16.mxu0 0
    %117 = vmatpush1.bf16.msra.mxu0 0
    %118 = vmatprep.subr.bf16.mxu0 0
    %119 = vmatpush1.bf16.msra.mxu0 0
    %120 = vmatprep.mubr.bf16.mxu0 0
    %121 = vmatmul.mubr.bf16.gmra.mrb[0].mxu0 %v16
    %v122 = vpop.f32.mrb[0].mxu0
    %v123 = vadd.f32 %v38, %v122
    %v124 = vpop.f32.mrb[0].mxu0
    %v125 = vpop.f32.mrb[0].mxu0
    %v126 = vpop.f32.mrb[0].mxu0
    %127 = vdwg.mxu0
    %128 = vst [vmem:[#allocation2] sm:$0x3] %v123
    // Predicated region
    $region14: #{dqn_forward.5} parent=1 // pred_check
      _
    $region15: #{dqn_forward.5} parent=1 // pred_check_branch
      %130 = sbr.rel (0) target = $region17
    $region16: #{dqn_forward.5} parent=1 // pred_region
      %s132 = ssub.s32 32, 32
      %133 = vsyncadd [#allocation3], %s132
      %s135 = sshll.u32 [#allocation2], 4
      %s136 = int_to_ptr.vmem [resolvable:$true] %s135
      %138 = dma.vmem_to_hbm [thread:$0]  %s136, 32, %s3, [#allocation3]
    $region17: #{dqn_forward.5} parent=1 // pred_fallthru
      _
    // Predicated region
    $region18: #{dqn_forward.5} parent=1 // pred_check
      _
    $region19: #{dqn_forward.5} parent=1 // pred_check_branch
      %140 = sbr.rel (0) target = $region21
    $region20: #{dqn_forward.5} parent=1 // pred_region
      %141 = dma.done [#allocation3], 32
    $region21: #{dqn_forward.5} parent=1 // pred_fallthru
      _
    %142 = vsyncpa [#allocation3], 1

// kernel: dqn_forward.4
$region0: #{dqn_forward.4}
  #allocation0 [shape = 'u32[]', space=smem, size = 0x4, offset = 0x4, fixed_abs, tag = 'smem constant byte address 0x4 - core index']
  #allocation1 [shape = 'u32[144,128]{1,0:T(1,128)}', space=vmem, size = 0x12000, scoped, tag = 'internal scratch']
  %s0 = inlined_call_operand.vmem [shape: bf16[8,256], index: 0, kind: input, shape index: {}]
  %s1 = inlined_call_operand.vmem [shape: bf16[256,32], index: 1, kind: input, shape index: {}]
  %s2 = inlined_call_operand.vmem [shape: f32[1,32], index: 2, kind: input, shape index: {}]
  %s3 = inlined_call_operand.vmem [shape: bf16[8,32], index: 3, kind: output, shape index: {}]
  %s4 = sld [smem:[#allocation0]]
  $region22: #{dqn_forward.4} parent=0
    _
  %s6 = ssub.s32 1, %s4
  %s7 = scalar_select 0, %s6, %s4
  // Predicated region
  $region2: #{dqn_forward.4} parent=0 // pred_check
    _
  $region3: #{dqn_forward.4} parent=0 // pred_check_branch
    %9 = sbr.rel (0) target = $region5
  $region4: #{dqn_forward.4} parent=0 // pred_region
    _
  $region5: #{dqn_forward.4} parent=0 // pred_fallthru
    _
  // Predicated region
  $region6: #{dqn_forward.4} parent=0 // pred_check
    _
  $region7: #{dqn_forward.4} parent=0 // pred_check_branch
    %11 = sbr.rel (0) target = $region9
  $region8: #{dqn_forward.4} parent=0 // pred_region
    _
  $region9: #{dqn_forward.4} parent=0 // pred_fallthru
    _
  // Predicated region
  $region10: #{dqn_forward.4} parent=0 // pred_check
    _
  $region11: #{dqn_forward.4} parent=0 // pred_check_branch
    %13 = sbr.rel (0) target = $region13
  $region12: #{dqn_forward.4} parent=0 // pred_region
    _
  $region13: #{dqn_forward.4} parent=0 // pred_fallthru
    _
  %v15 = vld [vmem:[%s0] sm:$0xff]
  %v16 = vld [vmem:[%s1] sm:$0xf]
  %v17 = vld [vmem:[%s1 + $0x4] sm:$0xf]
  %v18 = vld [vmem:[%s1 + $0x8] sm:$0xf]
  %v19 = vld [vmem:[%s1 + $0xc] sm:$0xf]
  %v20 = vld [vmem:[%s1 + $0x10] sm:$0xf]
  %v21 = vld [vmem:[%s1 + $0x14] sm:$0xf]
  %v22 = vld [vmem:[%s1 + $0x18] sm:$0xf]
  %v23 = vld [vmem:[%s1 + $0x1c] sm:$0xf]
  %v24 = vld [vmem:[%s1 + $0x20] sm:$0xf]
  %v25 = vld [vmem:[%s1 + $0x24] sm:$0xf]
  %v26 = vld [vmem:[%s1 + $0x28] sm:$0xf]
  %v27 = vld [vmem:[%s1 + $0x2c] sm:$0xf]
  %v28 = vld [vmem:[%s1 + $0x30] sm:$0xf]
  %v29 = vld [vmem:[%s1 + $0x34] sm:$0xf]
  %v30 = vld [vmem:[%s1 + $0x38] sm:$0xf]
  %v31 = vld [vmem:[%s1 + $0x3c] sm:$0xf]
  %v32 = vld [vmem:[%s1 + $0x40] sm:$0xf]
  %v33 = vld [vmem:[%s1 + $0x44] sm:$0xf]
  %v34 = vld [vmem:[%s1 + $0x48] sm:$0xf]
  %v35 = vld [vmem:[%s1 + $0x4c] sm:$0xf]
  %v36 = vld [vmem:[%s1 + $0x50] sm:$0xf]
  %v37 = vld [vmem:[%s1 + $0x54] sm:$0xf]
  %v38 = vld [vmem:[%s1 + $0x58] sm:$0xf]
  %v39 = vld [vmem:[%s1 + $0x5c] sm:$0xf]
  %v40 = vld [vmem:[%s1 + $0x60] sm:$0xf]
  %v41 = vld [vmem:[%s1 + $0x64] sm:$0xf]
  %v42 = vld [vmem:[%s1 + $0x68] sm:$0xf]
  %v43 = vld [vmem:[%s1 + $0x6c] sm:$0xf]
  %v44 = vld [vmem:[%s1 + $0x70] sm:$0xf]
  %v45 = vld [vmem:[%s1 + $0x74] sm:$0xf]
  %v46 = vld [vmem:[%s1 + $0x78] sm:$0xf]
  %v47 = vld [vmem:[%s1 + $0x7c] sm:$0xf]
  %v48 = vld [vmem:[%s2] sm:$0x1]
  %v50 = vlaneseq
  %v51 = vshrl.u32 %v50, 7
  %v52 = vsub.s32 0, %v51
  %v53 = vrot.slane %v48, %v52
  %v56 = vunpack.c.l.b16 %v15
  %v57 = vunpack.c.h.b16 %v15
  %v58 = vpack.c.b16 %v56, %v56
  %v59 = vpack.c.b16 %v57, %v57
  %v94 = vunpack.c.l.b16 %v16
  %v95 = vunpack.c.l.b16 %v17
  %v96 = vunpack.c.l.b16 %v18
  %v97 = vunpack.c.l.b16 %v19
  %v98 = vunpack.c.l.b16 %v20
  %v99 = vunpack.c.l.b16 %v21
  %v100 = vunpack.c.l.b16 %v22
  %v101 = vunpack.c.l.b16 %v23
  %v102 = vunpack.c.l.b16 %v24
  %v103 = vunpack.c.l.b16 %v25
  %v104 = vunpack.c.l.b16 %v26
  %v105 = vunpack.c.l.b16 %v27
  %v106 = vunpack.c.l.b16 %v28
  %v107 = vunpack.c.l.b16 %v29
  %v108 = vunpack.c.l.b16 %v30
  %v109 = vunpack.c.l.b16 %v31
  %v110 = vunpack.c.l.b16 %v32
  %v111 = vunpack.c.l.b16 %v33
  %v112 = vunpack.c.l.b16 %v34
  %v113 = vunpack.c.l.b16 %v35
  %v114 = vunpack.c.l.b16 %v36
  %v115 = vunpack.c.l.b16 %v37
  %v116 = vunpack.c.l.b16 %v38
  %v117 = vunpack.c.l.b16 %v39
  %v118 = vunpack.c.l.b16 %v40
  %v119 = vunpack.c.l.b16 %v41
  %v120 = vunpack.c.l.b16 %v42
  %v121 = vunpack.c.l.b16 %v43
  %v122 = vunpack.c.l.b16 %v44
  %v123 = vunpack.c.l.b16 %v45
  %v124 = vunpack.c.l.b16 %v46
  %v125 = vunpack.c.l.b16 %v47
  %v126 = vpack.c.b16 %v95, %v94
  %v127 = vpack.c.b16 %v97, %v96
  %v128 = vpack.c.b16 %v99, %v98
  %v129 = vpack.c.b16 %v101, %v100
  %v130 = vpack.c.b16 %v103, %v102
  %v131 = vpack.c.b16 %v105, %v104
  %v132 = vpack.c.b16 %v107, %v106
  %v133 = vpack.c.b16 %v109, %v108
  %v134 = vpack.c.b16 %v111, %v110
  %v135 = vpack.c.b16 %v113, %v112
  %v136 = vpack.c.b16 %v115, %v114
  %v137 = vpack.c.b16 %v117, %v116
  %v138 = vpack.c.b16 %v119, %v118
  %v139 = vpack.c.b16 %v121, %v120
  %v140 = vpack.c.b16 %v123, %v122
  %v141 = vpack.c.b16 %v125, %v124
  %158 = vmatprep.subr.bf16.mxu0 0
  %159 = vmatpush1.bf16.msra.mxu0 %v126
  %160 = vmatprep.subr.bf16.mxu0 0
  %161 = vmatpush1.bf16.msra.mxu0 %v127
  %162 = vmatprep.subr.bf16.mxu0 0
  %163 = vmatpush1.bf16.msra.mxu0 %v128
  %164 = vmatprep.subr.bf16.mxu0 0
  %165 = vmatpush1.bf16.msra.mxu0 %v129
  %166 = vmatprep.subr.bf16.mxu0 0
  %167 = vmatpush1.bf16.msra.mxu0 %v130
  %168 = vmatprep.subr.bf16.mxu0 0
  %169 = vmatpush1.bf16.msra.mxu0 %v131
  %170 = vmatprep.subr.bf16.mxu0 0
  %171 = vmatpush1.bf16.msra.mxu0 %v132
  %172 = vmatprep.subr.bf16.mxu0 0
  %173 = vmatpush1.bf16.msra.mxu0 %v133
  %174 = vmatprep.subr.bf16.mxu0 0
  %175 = vmatpush1.bf16.msra.mxu0 %v134
  %176 = vmatprep.subr.bf16.mxu0 0
  %177 = vmatpush1.bf16.msra.mxu0 %v135
  %178 = vmatprep.subr.bf16.mxu0 0
  %179 = vmatpush1.bf16.msra.mxu0 %v136
  %180 = vmatprep.subr.bf16.mxu0 0
  %181 = vmatpush1.bf16.msra.mxu0 %v137
  %182 = vmatprep.subr.bf16.mxu0 0
  %183 = vmatpush1.bf16.msra.mxu0 %v138
  %184 = vmatprep.subr.bf16.mxu0 0
  %185 = vmatpush1.bf16.msra.mxu0 %v139
  %186 = vmatprep.subr.bf16.mxu0 0
  %187 = vmatpush1.bf16.msra.mxu0 %v140
  %188 = vmatprep.subr.bf16.mxu0 0
  %189 = vmatpush1.bf16.msra.mxu0 %v141
  %190 = vmatprep.mubr.bf16.mxu0 %v59
  %191 = vmatmul.mubr.bf16.gmra.mrb[0].mxu0 %v58
  %v192 = vpop.f32.mrb[0].mxu0
  %v193 = vadd.f32 %v53, %v192
  %v194 = vpop.f32.mrb[0].mxu0
  %v195 = vpop.f32.mrb[0].mxu0
  %v196 = vpop.f32.mrb[0].mxu0
  %197 = vdwg.mxu0
  %v198 = vmax.f32 %v193, 0.0
  %v199 = vpack.c.bf16 %v198, %v198
  %vm200 = vcmask 257024
  %201 = vst.msk [vmem:[%s3] sm:$0xf] %vm200, %v199
  // Predicated region
  $region14: #{dqn_forward.4} parent=0 // pred_check
    _
  $region15: #{dqn_forward.4} parent=0 // pred_check_branch
    %203 = sbr.rel (0) target = $region17
  $region16: #{dqn_forward.4} parent=0 // pred_region
    _
  $region17: #{dqn_forward.4} parent=0 // pred_fallthru
    _
  // Predicated region
  $region18: #{dqn_forward.4} parent=0 // pred_check
    _
  $region19: #{dqn_forward.4} parent=0 // pred_check_branch
    %205 = sbr.rel (0) target = $region21
  $region20: #{dqn_forward.4} parent=0 // pred_region
    _
  $region21: #{dqn_forward.4} parent=0 // pred_fallthru
    _

</llo_original>
